<compile_context>
chip_gen: v7x
topology: tpu7x:2x2x1
jax: 0.10.0
libtpu: 0.0.40
codegen_flags: <defaults>
</compile_context>

<pallas_src>
import jax
import jax.numpy as jnp
from jax.experimental import pallas as pl
from jax.experimental.pallas import tpu as pltpu

# Per-block byte cap. in + out blocks, each double-buffered => <= 4x this in
# VMEM, which fits the default scoped-VMEM limit on every generation
# (v5e 16 MiB, v6e 32 MiB, v7x 32 MiB scoped / 64 MiB physical).
_TILE_BYTES_CAP = 2 * 1024 * 1024

# Upper bound on the lane (last) dim of a block; a few KiB-wide slabs already
# saturate the store path, and this keeps the row grid long enough to shard.
_LANE_CAP = 4096


def _identity_kernel(x_ref, o_ref):
    # Pure pass-through: copy the current VMEM tile to the (aliased) output tile.
    o_ref[...] = x_ref[...]


def _largest_divisor(n: int, base: int, cap: int) -> int:
    """Largest d with d % base == 0, n % d == 0, d <= cap (0 if none exists)."""
    best = 0
    d = base
    cap = min(cap, n)
    while d <= cap:
        if n % d == 0:
            best = d
        d += base
    return best


def _min_sublane(dtype) -> int:
    # Sub-32-bit dtypes pack along sublanes: f32/i32 -> 8, bf16/f16 -> 16, 8-bit -> 32.
    return 8 * max(1, 4 // jnp.dtype(dtype).itemsize)


def _pick_lane(total: int, min_sub: int) -> int:
    """Pick the lane (last-dim) width for the flattened 2-D view.

    Prefer the largest multiple of 128 that divides `total` AND leaves a row
    count that is a multiple of the sublane minimum (fully unmasked tiles);
    otherwise fall back to the largest lane-dense divisor; 0 if none.
    """
    best_any = 0
    best_aligned = 0
    lane = 128
    cap = min(_LANE_CAP, total)
    while lane <= cap:
        if total % lane == 0:
            best_any = lane
            if (total // lane) % min_sub == 0:
                best_aligned = lane
        lane += 128
    return best_aligned if best_aligned else best_any


def dummy_transformer_block(x: jax.Array) -> jax.Array:
    """Identity forward of DummyTransformerBlock via a lane-dense Pallas copy kernel.

    x: any shape (GPT-style [batch, seq, emb] expected). Returns same shape/dtype.
    """
    orig_shape = x.shape
    dtype = x.dtype
    itemsize = jnp.dtype(dtype).itemsize
    total = int(x.size)
    min_sub = _min_sublane(dtype)

    # ---- pick a lane-dense 2-D layout: last dim a large multiple of 128 -----
    lane = _pick_lane(total, min_sub)
    if lane == 0:
        # Element count not divisible by 128: present the whole array as one
        # block (block_shape == full array dims bypasses the (8, 128) rule).
        # TODO(synk): for very large, 128-indivisible inputs this single block
        # could exceed VMEM; pad-and-slice would be needed in that case.
        x2d = x.reshape(-1, orig_shape[-1]) if x.ndim > 1 else x.reshape(1, -1)
        rows, cols = x2d.shape
        tile_r = rows
    else:
        cols = lane
        rows = total // lane
        x2d = x.reshape(rows, cols)
        row_cap = max(1, _TILE_BYTES_CAP // (cols * itemsize))
        # Largest row tile that (a) divides rows, (b) is sublane-aligned, and
        # (c) fits the per-block VMEM budget.
        tile_r = _largest_divisor(rows, min_sub, row_cap)
        if tile_r == 0:
            # No suitable divisor (e.g. rows < min_sub): full row extent is
            # always a legal block shape.
            tile_r = rows

    grid = (rows // tile_r,)

    out2d = pl.pallas_call(
        _identity_kernel,
        out_shape=jax.ShapeDtypeStruct((rows, cols), dtype),
        grid=grid,
        in_specs=[pl.BlockSpec((tile_r, cols), lambda i: (i, 0))],
        out_specs=pl.BlockSpec((tile_r, cols), lambda i: (i, 0)),
        # Output aliases the input buffer: no second HBM allocation for the result.
        input_output_aliases={0: 0},
        compiler_params=pltpu.CompilerParams(
            # Row tiles are independent -> shard the grid across both TCs on
            # v7x; measured near-zero cost on single-TC v5e/v6e.
            dimension_semantics=("parallel",),
        ),
    )(x2d)

    return out2d.reshape(orig_shape)


if __name__ == "__main__":
    # DummyTransformerBlock.__init__ takes a cfg but defines no parameters,
    # so there is nothing to initialize — forward is identity.
    cfg = {"emb_dim": 32}  # shape convention only; no weights exist.

    key = jax.random.PRNGKey(0)
    batch, seq, emb = 2, 8, cfg["emb_dim"]
    x = jax.random.normal(key, (batch, seq, emb), dtype=jnp.float32)

    y = jax.jit(dummy_transformer_block)(x)
    y = jax.block_until_ready(y)

    assert y.shape == x.shape and y.dtype == x.dtype
    assert bool(jnp.all(y == x))
    print("KERNEL_OK")
</pallas_src>

<mosaic_0001>
module attributes {stable_mosaic.version = 11 : i64} {
  func.func @_identity_kernel(%arg0: i32, %arg1: memref<1x512xf32, #tpu.memory_space<vmem>>, %arg2: memref<1x512xf32, #tpu.memory_space<vmem>>) attributes {dimension_semantics = [#tpu.dimension_semantics<parallel>], iteration_bounds = array<i64: 1>, scalar_prefetch = 0 : i64, scratch_operands = 0 : i64, tpu.core_type = #tpu.core_type<tc>, window_params = [{transform_indices = @transform_0, window_bounds = array<i64: 1, 512>}, {transform_indices = @transform_1, window_bounds = array<i64: 1, 512>}]} {
    %c0 = arith.constant 0 : index
    %c0_0 = arith.constant 0 : index
    %0 = vector.load %arg1[%c0, %c0_0] : memref<1x512xf32, #tpu.memory_space<vmem>>, vector<1x512xf32>
    %c0_1 = arith.constant 0 : index
    %c0_2 = arith.constant 0 : index
    %1 = vector.load %arg2[%c0_1, %c0_2] : memref<1x512xf32, #tpu.memory_space<vmem>>, vector<1x512xf32>
    tpu.vector_store %arg2[%c0_1, %c0_2], %0 {strides = array<i32>} : memref<1x512xf32, #tpu.memory_space<vmem>>, vector<1x512xf32>,
    return
  }
  func.func @transform_0(%arg0: i32) -> (i32, i32) {
    %c0_i32 = arith.constant 0 : i32
    %c0_i32_0 = arith.constant 0 : i32
    return %arg0, %c0_i32 : i32, i32
  }
  func.func @transform_1(%arg0: i32) -> (i32, i32) {
    %c0_i32 = arith.constant 0 : i32
    %c0_i32_0 = arith.constant 0 : i32
    return %arg0, %c0_i32 : i32, i32
  }
}

</mosaic_0001>

<llo_original>
// kernel: dummy_transformer_block.1
$region0: #{dummy_transformer_block.1}
  #allocation0 [shape = 'u32[]', space=smem, size = 0x4, offset = 0x4, fixed_abs, tag = 'smem constant byte address 0x4 - core index']
  #allocation1 [shape = 'u32[144,128]{1,0:T(1,128)}', space=vmem, size = 0x12000, scoped, tag = 'internal scratch']
  %s0 = inlined_call_operand.vmem [shape: f32[1,512], index: 0, kind: input, shape index: {}, may-alias: {0,1}]
  %s1 = inlined_call_operand.vmem [shape: f32[1,512], index: 1, kind: output, shape index: {}, may-alias: {0,1}]
  %s2 = sld [smem:[#allocation0]]
  $region14: #{dummy_transformer_block.1} parent=0
    _
  %s4 = ssub.s32 1, %s2
  %s5 = scalar_select 0, %s4, %s2
  // Predicated region
  $region2: #{dummy_transformer_block.1} parent=0 // pred_check
    _
  $region3: #{dummy_transformer_block.1} parent=0 // pred_check_branch
    %7 = sbr.rel (0) target = $region5
  $region4: #{dummy_transformer_block.1} parent=0 // pred_region
    _
  $region5: #{dummy_transformer_block.1} parent=0 // pred_fallthru
    _
  %v8 = vld [vmem:[%s0] sm:$0xf]
  %v9 = vlaneseq
  %vm10 = vcmp.ge.s32.totalorder %v9, 0
  %vm11 = vcmp.lt.s32.totalorder %v9, 512
  %vm12 = vmand %vm10, %vm11
  %13 = vst.msk [vmem:[%s1] sm:$0xf] %vm12, %v8
  // Predicated region
  $region6: #{dummy_transformer_block.1} parent=0 // pred_check
    _
  $region7: #{dummy_transformer_block.1} parent=0 // pred_check_branch
    %15 = sbr.rel (0) target = $region9
  $region8: #{dummy_transformer_block.1} parent=0 // pred_region
    _
  $region9: #{dummy_transformer_block.1} parent=0 // pred_fallthru
    _
  // Predicated region
  $region10: #{dummy_transformer_block.1} parent=0 // pred_check
    _
  $region11: #{dummy_transformer_block.1} parent=0 // pred_check_branch
    %17 = sbr.rel (0) target = $region13
  $region12: #{dummy_transformer_block.1} parent=0 // pred_region
    _
  $region13: #{dummy_transformer_block.1} parent=0 // pred_fallthru
    _

</llo_original>
